<compile_context>
chip_gen: v5e
topology: v5e:2x2
jax: 0.10.0
libtpu: 0.0.40
codegen_flags: <defaults>
</compile_context>

<pallas_src>
import jax
import jax.numpy as jnp
from jax.experimental import pallas as pl
from jax.experimental.pallas import tpu as pltpu

_LANE = 128      # lane width (last dim)
_SUBLANE = 8     # sublane width (second-to-last dim)


def _round_up(n, m):
    return ((n + m - 1) // m) * m


def _cdiv(a, b):
    return -(-a // b)


def fc_kernel(x_ref, w_ref, b_ref, o_ref):
    # (TB, K) @ (K, lanes) on the MXU with f32 accumulation; bias broadcast
    # over rows on the VPU; cast to the output dtype on store.
    acc = jnp.dot(x_ref[...], w_ref[...], preferred_element_type=jnp.float32)
    o_ref[...] = (acc + b_ref[...]).astype(o_ref.dtype)


def prepare_fc_params(weight, bias, param_dtype=None):
    """One-time parameter prep (run at load time, NOT per forward call).

    weight: (out_chann, fc_num)  -- PyTorch nn.Linear layout
    bias:   (out_chann,)

    Returns (w_packed, b_packed, meta):
      w_packed: block-diagonal transposed weight of shape
                (pack*fc_num, lanes); copy j maps input columns
                [j*fc_num, (j+1)*fc_num) to lanes [j*out_chann, (j+1)*out_chann).
      b_packed: (1, lanes) float32 bias, tiled `pack` times.
      meta    : (fc_num, out_chann, pack, lanes)
    Packing rule:
      out_chann % 128 == 0 -> pack=1, lanes=out_chann       (already lane-dense)
      128 % out_chann == 0 -> pack=128//out_chann, lanes=128 (block-diag pack)
      otherwise            -> pack=1, lanes=round_up(out_chann,128) (fallback)
    """
    out_chann, fc_num = weight.shape
    w_t = weight.T                                   # (fc_num, out_chann)
    if param_dtype is not None:
        w_t = w_t.astype(param_dtype)

    if out_chann % _LANE == 0:
        pack, lanes = 1, out_chann
    elif _LANE % out_chann == 0:
        pack, lanes = _LANE // out_chann, _LANE
    else:
        pack, lanes = 1, _round_up(out_chann, _LANE)

    w_packed = jnp.zeros((pack * fc_num, lanes), dtype=w_t.dtype)
    b_packed = jnp.zeros((1, lanes), dtype=jnp.float32)
    bias_f32 = bias.astype(jnp.float32)
    for j in range(pack):
        w_packed = w_packed.at[j * fc_num:(j + 1) * fc_num,
                               j * out_chann:(j + 1) * out_chann].set(w_t)
        b_packed = b_packed.at[0, j * out_chann:(j + 1) * out_chann].set(bias_f32)
    return w_packed, b_packed, (fc_num, out_chann, pack, lanes)


def fc_classifier_forward(x, w_packed, b_packed, meta, *, block_rows=8192):
    """y = x @ weight.T + bias, matching torch.nn.Linear.

    x          : (B, fc_num)  (any dtype; bf16 inputs are used as-is, f32 accum)
    w_packed,
    b_packed,
    meta       : from prepare_fc_params
    block_rows : batch tile size in LOGICAL rows (sweep; v7x likes larger,
                 v5e's 16 MiB scoped VMEM default caps growth first).
    """
    fc_num, out_chann, pack, lanes = meta
    B, k = x.shape
    assert k == fc_num, "input feature dim must match fc_num"
    out_dtype = x.dtype

    # --- batch tiling on PACKED rows, minimal padding ----------------------
    bp = _cdiv(B, pack)                               # packed rows needed
    blk = max(_SUBLANE, block_rows // pack)           # target packed-row tile
    n_tiles = _cdiv(bp, blk)
    tb = _round_up(_cdiv(bp, n_tiles), _SUBLANE)      # pad < 8*n_tiles pkd rows
    bp_pad = tb * n_tiles
    b_pad = bp_pad * pack

    if b_pad != B:
        x = jnp.pad(x, ((0, b_pad - B), (0, 0)))      # only extra pass if padded
    xp = x.reshape(bp_pad, pack * fc_num)             # free row-major reshape
    kdim = pack * fc_num

    cost = pl.CostEstimate(
        flops=2 * bp_pad * kdim * lanes,
        transcendentals=0,
        bytes_accessed=(xp.size * xp.dtype.itemsize
                        + w_packed.size * w_packed.dtype.itemsize
                        + b_packed.size * b_packed.dtype.itemsize
                        + bp_pad * lanes * jnp.dtype(out_dtype).itemsize),
    )

    y_packed = pl.pallas_call(
        fc_kernel,
        out_shape=jax.ShapeDtypeStruct((bp_pad, lanes), out_dtype),
        grid_spec=pltpu.PrefetchScalarGridSpec(
            num_scalar_prefetch=0,
            grid=(n_tiles,),
            in_specs=[
                # x: streamed per batch tile (double-buffered by Pallas).
                pl.BlockSpec((tb, kdim), lambda i: (i, 0)),
                # weight / bias: constant block index -> fetched once, resident.
                pl.BlockSpec((kdim, lanes), lambda i: (0, 0)),
                pl.BlockSpec((1, lanes), lambda i: (0, 0)),
            ],
            out_specs=pl.BlockSpec((tb, lanes), lambda i: (i, 0)),
        ),
        compiler_params=pltpu.CompilerParams(
            dimension_semantics=("parallel",)),       # rows independent
        cost_estimate=cost,
    )(xp, w_packed, b_packed)

    # --- unpack -------------------------------------------------------------
    if lanes == pack * out_chann:
        # No padded lanes: reshape is free (row-major); result already dense.
        y = y_packed.reshape(b_pad, out_chann)
    else:
        # Fallback (out_chann neither divides nor is a multiple of 128):
        # pack == 1, strip the zero lane padding.
        y = y_packed[:, :out_chann]
    if b_pad != B:
        y = y[:B]
    return y


if __name__ == "__main__":
    # Shapes implied by the module: fc_num=32 input features, out_chann=16.
    fc_num, out_chann = 32, 16

    key = jax.random.PRNGKey(0)
    kx, kw, kb, kx2 = jax.random.split(key, 4)

    # Deterministic init mimicking nn.Linear's uniform(-1/sqrt(in), 1/sqrt(in)).
    bound = 1.0 / jnp.sqrt(jnp.float32(fc_num))
    weight = jax.random.uniform(kw, (out_chann, fc_num), jnp.float32,
                                minval=-bound, maxval=bound)
    bias = jax.random.uniform(kb, (out_chann,), jnp.float32,
                              minval=-bound, maxval=bound)

    # --- f32 path, tiny batch (single tile, block-diag pack=8) -----------
    w_p, b_p, meta = prepare_fc_params(weight, bias)
    x = jax.random.normal(kx, (8, fc_num), dtype=jnp.float32)
    y = fc_classifier_forward(x, w_p, b_p, meta)
    jax.block_until_ready(y)
    y_ref = x @ weight.T + bias
    assert y.shape == (8, out_chann)
    assert jnp.allclose(y, y_ref, atol=1e-5, rtol=1e-5)

    # --- multi-tile grid + batch padding (B not a tile multiple) ---------
    x2 = jax.random.normal(kx2, (300, fc_num), dtype=jnp.float32)
    y2 = fc_classifier_forward(x2, w_p, b_p, meta, block_rows=128)
    jax.block_until_ready(y2)
    y2_ref = x2 @ weight.T + bias
    assert y2.shape == (300, out_chann)
    assert jnp.allclose(y2, y2_ref, atol=1e-5, rtol=1e-5)

    # --- bf16 operands arriving as bf16 (no wrapper-side cast) -----------
    w_bf, b_bf, meta_bf = prepare_fc_params(weight, bias,
                                            param_dtype=jnp.bfloat16)
    x2_bf = x2.astype(jnp.bfloat16)   # stands in for an upstream bf16 producer
    y3 = fc_classifier_forward(x2_bf, w_bf, b_bf, meta_bf, block_rows=128)
    jax.block_until_ready(y3)
    assert y3.shape == (300, out_chann)
    assert jnp.allclose(y3.astype(jnp.float32), y2_ref, atol=5e-2, rtol=5e-2)

    # --- fallback path: out_chann not commensurate with 128 lanes --------
    oc2, fn2 = 200, 48
    w2 = jax.random.uniform(kw, (oc2, fn2), jnp.float32, minval=-0.1, maxval=0.1)
    bb2 = jax.random.uniform(kb, (oc2,), jnp.float32, minval=-0.1, maxval=0.1)
    w2_p, b2_p, meta2 = prepare_fc_params(w2, bb2)
    x3 = jax.random.normal(kx, (16, fn2), dtype=jnp.float32)
    y4 = fc_classifier_forward(x3, w2_p, b2_p, meta2)
    jax.block_until_ready(y4)
    y4_ref = x3 @ w2.T + bb2
    assert y4.shape == (16, oc2)
    assert jnp.allclose(y4, y4_ref, atol=1e-5, rtol=1e-5)

    print("KERNEL_OK")
</pallas_src>

<mosaic_0001>
module attributes {stable_mosaic.version = 11 : i64} {
  func.func @fc_kernel(%arg0: i32, %arg1: memref<8x256xf32, #tpu.memory_space<vmem>>, %arg2: memref<256x128xf32, #tpu.memory_space<vmem>>, %arg3: memref<1x128xf32, #tpu.memory_space<vmem>>, %arg4: memref<8x128xf32, #tpu.memory_space<vmem>>) attributes {dimension_semantics = [#tpu.dimension_semantics<parallel>], iteration_bounds = array<i64: 1>, scalar_prefetch = 0 : i64, scratch_operands = 0 : i64, tpu.core_type = #tpu.core_type<tc>, window_params = [{transform_indices = @transform_0, window_bounds = array<i64: 8, 256>}, {pipeline_mode = #tpu.pipeline_mode<synchronous>, transform_indices = @transform_1, window_bounds = array<i64: 256, 128>}, {pipeline_mode = #tpu.pipeline_mode<synchronous>, transform_indices = @transform_2, window_bounds = array<i64: 1, 128>}, {transform_indices = @transform_3, window_bounds = array<i64: 8, 128>}]} {
    %c0 = arith.constant 0 : index
    %c0_0 = arith.constant 0 : index
    %0 = vector.load %arg1[%c0, %c0_0] : memref<8x256xf32, #tpu.memory_space<vmem>>, vector<8x256xf32>
    %c0_1 = arith.constant 0 : index
    %c0_2 = arith.constant 0 : index
    %1 = vector.load %arg2[%c0_1, %c0_2] : memref<256x128xf32, #tpu.memory_space<vmem>>, vector<256x128xf32>
    %cst = arith.constant dense<0.000000e+00> : vector<8x128xf32>
    %2 = tpu.matmul %0, %1, %cst {dimension_numbers = #tpu.dot_dimension_numbers<[1], [0], [0], [1], [0, 0, 1, 1], [], []>} : vector<8x256xf32>, vector<256x128xf32>, vector<8x128xf32> -> vector<8x128xf32>
    %c0_3 = arith.constant 0 : index
    %c0_4 = arith.constant 0 : index
    %3 = vector.load %arg3[%c0_3, %c0_4] : memref<1x128xf32, #tpu.memory_space<vmem>>, vector<1x128xf32>
    %4 = vector.broadcast %3 : vector<1x128xf32> to vector<8x128xf32>
    %5 = arith.addf %2, %4 : vector<8x128xf32>
    %c0_5 = arith.constant 0 : index
    %c0_6 = arith.constant 0 : index
    %6 = vector.load %arg4[%c0_5, %c0_6] : memref<8x128xf32, #tpu.memory_space<vmem>>, vector<8x128xf32>
    tpu.vector_store %arg4[%c0_5, %c0_6], %5 {strides = array<i32>} : memref<8x128xf32, #tpu.memory_space<vmem>>, vector<8x128xf32>,
    return
  }
  func.func @transform_0(%arg0: i32) -> (i32, i32) {
    %c0_i32 = arith.constant 0 : i32
    %c0_i32_0 = arith.constant 0 : i32
    return %arg0, %c0_i32 : i32, i32
  }
  func.func @transform_1(%arg0: i32) -> (i32, i32) {
    %c0_i32 = arith.constant 0 : i32
    %c0_i32_0 = arith.constant 0 : i32
    %c0_i32_1 = arith.constant 0 : i32
    return %c0_i32, %c0_i32_0 : i32, i32
  }
  func.func @transform_2(%arg0: i32) -> (i32, i32) {
    %c0_i32 = arith.constant 0 : i32
    %c0_i32_0 = arith.constant 0 : i32
    %c0_i32_1 = arith.constant 0 : i32
    return %c0_i32, %c0_i32_0 : i32, i32
  }
  func.func @transform_3(%arg0: i32) -> (i32, i32) {
    %c0_i32 = arith.constant 0 : i32
    %c0_i32_0 = arith.constant 0 : i32
    return %arg0, %c0_i32 : i32, i32
  }
}

</mosaic_0001>

<llo_original>
// kernel: tpu_custom_call.1
$region0: #{tpu_custom_call.1}
  #allocation0 [shape = 'u32[]', space=smem, size = 0x4, offset = 0x4, fixed_abs, tag = 'smem constant byte address 0x4 - core index']
  #allocation1 [shape = 'u32[72,128]{1,0:T(1,128)}', space=vmem, size = 0x9000, scoped, tag = 'internal scratch']
  %s0 = inlined_call_operand.hbm [shape: f32[8,256], index: 0, kind: input, shape index: {}]
  %s1 = inlined_call_operand.hbm [shape: f32[256,128], index: 1, kind: input, shape index: {}]
  %s2 = inlined_call_operand.vmem [shape: f32[1,128], index: 2, kind: input, shape index: {}]
  %s3 = inlined_call_operand.hbm [shape: f32[8,128], index: 3, kind: output, shape index: {}]
  %s4 = sld [smem:[#allocation0]]
  $region30: #{tpu_custom_call.1} parent=0
    _
  %s6 = ssub.s32 1, %s4
  %s7 = scalar_select 0, %s6, %s4
  $region1: #{tpu_custom_call.1} parent=0
    #allocation2 [shape = 'u8[8192]{0}', space=vmem, size = 0x2000, scoped, tag = 'input window, operand 0, single buffered']
    #allocation3 [shape = 's32[1]{0}', space=sflag, size = 0x4, scoped, tag = 'scoped memory for tpu_custom_call.1']
    #allocation4 [shape = 's32[1]{0}', space=sflag, size = 0x4, scoped, tag = 'scoped memory for tpu_custom_call.1']
    #allocation5 [shape = 'u8[131072]{0}', space=vmem, size = 0x20000, scoped, tag = 'input window, operand 1, single buffered']
    #allocation6 [shape = 's32[1]{0}', space=sflag, size = 0x4, scoped, tag = 'scoped memory for tpu_custom_call.1']
    #allocation7 [shape = 'u8[4096]{0}', space=vmem, size = 0x1000, scoped, tag = 'output window, operand 0, single buffered']
    %8 = vsyncpa [#allocation3], 0
    %9 = vsyncpa [#allocation6], 0
    %10 = vsyncpa [#allocation4], 0
    // Predicated region
    $region2: #{tpu_custom_call.1} parent=1 // pred_check
      _
    $region3: #{tpu_custom_call.1} parent=1 // pred_check_branch
      %12 = sbr.rel (0) target = $region5
    $region4: #{tpu_custom_call.1} parent=1 // pred_region
      %14 = vsyncadd [#allocation3], 0
      %s16 = sshll.u32 %s0, 4
      %s17 = int_to_ptr.hbm [resolvable:$true] %s16
      %s18 = sshll.u32 [#allocation2], 4
      %s19 = int_to_ptr.vmem [resolvable:$true] %s18
      %21 = dma.hbm_to_vmem [thread:$0]  %s17, 256, %s19, [#allocation3]
    $region5: #{tpu_custom_call.1} parent=1 // pred_fallthru
      _
    // Predicated region
    $region6: #{tpu_custom_call.1} parent=1 // pred_check
      _
    $region7: #{tpu_custom_call.1} parent=1 // pred_check_branch
      %23 = sbr.rel (0) target = $region9
    $region8: #{tpu_custom_call.1} parent=1 // pred_region
      %25 = vsyncadd [#allocation6], 0
      %s26 = sshll.u32 %s1, 4
      %s27 = int_to_ptr.hbm [resolvable:$true] %s26
      %s28 = sshll.u32 [#allocation5], 4
      %s29 = int_to_ptr.vmem [resolvable:$true] %s28
      %34 = dma.hbm_to_vmem [thread:$0]  %s27, 4096, %s29, [#allocation6], 128, 128, 8
    $region9: #{tpu_custom_call.1} parent=1 // pred_fallthru
      _
    // Predicated region
    $region10: #{tpu_custom_call.1} parent=1 // pred_check
      _
    $region11: #{tpu_custom_call.1} parent=1 // pred_check_branch
      %36 = sbr.rel (0) target = $region13
    $region12: #{tpu_custom_call.1} parent=1 // pred_region
      _
    $region13: #{tpu_custom_call.1} parent=1 // pred_fallthru
      _
    // Predicated region
    $region14: #{tpu_custom_call.1} parent=1 // pred_check
      _
    $region15: #{tpu_custom_call.1} parent=1 // pred_check_branch
      %38 = sbr.rel (0) target = $region17
    $region16: #{tpu_custom_call.1} parent=1 // pred_region
      %40 = dma.done [#allocation3], 256
    $region17: #{tpu_custom_call.1} parent=1 // pred_fallthru
      _
    // Predicated region
    $region18: #{tpu_custom_call.1} parent=1 // pred_check
      _
    $region19: #{tpu_custom_call.1} parent=1 // pred_check_branch
      %42 = sbr.rel (0) target = $region21
    $region20: #{tpu_custom_call.1} parent=1 // pred_region
      %44 = dma.done [#allocation6], 4096
    $region21: #{tpu_custom_call.1} parent=1 // pred_fallthru
      _
    %v45 = vld [vmem:[#allocation2] sm:$0xff]
    %v46 = vld [vmem:[#allocation2 + $0x8] sm:$0xff]
    %v47 = vld [vmem:[#allocation5] sm:$0xff]
    %v48 = vld [vmem:[#allocation5 + $0x8] sm:$0xff]
    %v49 = vld [vmem:[#allocation5 + $0x10] sm:$0xff]
    %v50 = vld [vmem:[#allocation5 + $0x18] sm:$0xff]
    %v51 = vld [vmem:[#allocation5 + $0x20] sm:$0xff]
    %v52 = vld [vmem:[#allocation5 + $0x28] sm:$0xff]
    %v53 = vld [vmem:[#allocation5 + $0x30] sm:$0xff]
    %v54 = vld [vmem:[#allocation5 + $0x38] sm:$0xff]
    %v55 = vld [vmem:[#allocation5 + $0x40] sm:$0xff]
    %v56 = vld [vmem:[#allocation5 + $0x48] sm:$0xff]
    %v57 = vld [vmem:[#allocation5 + $0x50] sm:$0xff]
    %v58 = vld [vmem:[#allocation5 + $0x58] sm:$0xff]
    %v59 = vld [vmem:[#allocation5 + $0x60] sm:$0xff]
    %v60 = vld [vmem:[#allocation5 + $0x68] sm:$0xff]
    %v61 = vld [vmem:[#allocation5 + $0x70] sm:$0xff]
    %v62 = vld [vmem:[#allocation5 + $0x78] sm:$0xff]
    %v63 = vld [vmem:[#allocation5 + $0x80] sm:$0xff]
    %v64 = vld [vmem:[#allocation5 + $0x88] sm:$0xff]
    %v65 = vld [vmem:[#allocation5 + $0x90] sm:$0xff]
    %v66 = vld [vmem:[#allocation5 + $0x98] sm:$0xff]
    %v67 = vld [vmem:[#allocation5 + $0xa0] sm:$0xff]
    %v68 = vld [vmem:[#allocation5 + $0xa8] sm:$0xff]
    %v69 = vld [vmem:[#allocation5 + $0xb0] sm:$0xff]
    %v70 = vld [vmem:[#allocation5 + $0xb8] sm:$0xff]
    %v71 = vld [vmem:[#allocation5 + $0xc0] sm:$0xff]
    %v72 = vld [vmem:[#allocation5 + $0xc8] sm:$0xff]
    %v73 = vld [vmem:[#allocation5 + $0xd0] sm:$0xff]
    %v74 = vld [vmem:[#allocation5 + $0xd8] sm:$0xff]
    %v75 = vld [vmem:[#allocation5 + $0xe0] sm:$0xff]
    %v76 = vld [vmem:[#allocation5 + $0xe8] sm:$0xff]
    %v77 = vld [vmem:[#allocation5 + $0xf0] sm:$0xff]
    %v78 = vld [vmem:[#allocation5 + $0xf8] sm:$0xff]
    %v79 = vld [vmem:[%s2] sm:$0x1]
    %v81 = vperm.slane %v79, 0
    %83 = vmatpush.msra.mxu0 %v62
    %84 = vmatpush.msra.mxu0 %v61
    %85 = vmatpush.msra.mxu0 %v60
    %86 = vmatpush.msra.mxu0 %v59
    %87 = vmatpush.msra.mxu0 %v58
    %88 = vmatpush.msra.mxu0 %v57
    %89 = vmatpush.msra.mxu0 %v56
    %90 = vmatpush.msra.mxu0 %v55
    %91 = vmatpush.msra.mxu0 %v54
    %92 = vmatpush.msra.mxu0 %v53
    %93 = vmatpush.msra.mxu0 %v52
    %94 = vmatpush.msra.mxu0 %v51
    %95 = vmatpush.msra.mxu0 %v50
    %96 = vmatpush.msra.mxu0 %v49
    %97 = vmatpush.msra.mxu0 %v48
    %98 = vmatpush.msra.mxu0 %v47
    %99 = vmatmul.f32.gmra.mxu0 %v45
    %v100 = vpop.f32.mrf.mxu0
    %v101 = vadd.f32 %v81, %v100
    %102 = vdwg.mxu0
    %103 = vmatpush.msra.mxu0 %v78
    %104 = vmatpush.msra.mxu0 %v77
    %105 = vmatpush.msra.mxu0 %v76
    %106 = vmatpush.msra.mxu0 %v75
    %107 = vmatpush.msra.mxu0 %v74
    %108 = vmatpush.msra.mxu0 %v73
    %109 = vmatpush.msra.mxu0 %v72
    %110 = vmatpush.msra.mxu0 %v71
    %111 = vmatpush.msra.mxu0 %v70
    %112 = vmatpush.msra.mxu0 %v69
    %113 = vmatpush.msra.mxu0 %v68
    %114 = vmatpush.msra.mxu0 %v67
    %115 = vmatpush.msra.mxu0 %v66
    %116 = vmatpush.msra.mxu0 %v65
    %117 = vmatpush.msra.mxu0 %v64
    %118 = vmatpush.msra.mxu0 %v63
    %119 = vmatmul.f32.gmra.mxu0 %v46
    %v120 = vpop.f32.mrf.mxu0
    %v121 = vadd.f32 %v101, %v120
    %122 = vdwg.mxu0
    %123 = vst [vmem:[#allocation7] sm:$0xff] %v121
    // Predicated region
    $region22: #{tpu_custom_call.1} parent=1 // pred_check
      _
    $region23: #{tpu_custom_call.1} parent=1 // pred_check_branch
      %125 = sbr.rel (0) target = $region25
    $region24: #{tpu_custom_call.1} parent=1 // pred_region
      %127 = vsyncadd [#allocation4], 0
      %s129 = sshll.u32 [#allocation7], 4
      %s130 = int_to_ptr.vmem [resolvable:$true] %s129
      %s131 = sshll.u32 %s3, 4
      %s132 = int_to_ptr.hbm [resolvable:$true] %s131
      %134 = dma.vmem_to_hbm [thread:$0]  %s130, 128, %s132, [#allocation4]
    $region25: #{tpu_custom_call.1} parent=1 // pred_fallthru
      _
    // Predicated region
    $region26: #{tpu_custom_call.1} parent=1 // pred_check
      _
    $region27: #{tpu_custom_call.1} parent=1 // pred_check_branch
      %136 = sbr.rel (0) target = $region29
    $region28: #{tpu_custom_call.1} parent=1 // pred_region
      %138 = dma.done [#allocation4], 128
    $region29: #{tpu_custom_call.1} parent=1 // pred_fallthru
      _
    %139 = vsyncpa [#allocation3], 1
    %140 = vsyncpa [#allocation6], 1
    %141 = vsyncpa [#allocation4], 1

</llo_original>
